<compile_context>
chip_gen: v7x
topology: tpu7x:2x2x1
jax: 0.10.0
libtpu: 0.0.40
codegen_flags: <defaults>
</compile_context>

<pallas_src>
import functools
import math

import numpy as np
import jax
import jax.numpy as jnp
from jax.experimental import pallas as pl
from jax.experimental.pallas import tpu as pltpu


# ----------------------------------------------------------------------------
# Kernel 1: per-time-frame signal model  y[t] = CA_trans[t] + (baseline - M_steady)
# ----------------------------------------------------------------------------
def _dce_signal_kernel(mult_ref, xr_ref, xi_ref, base_ref, yr_ref, yi_ref, *,
                       TR, R1, R1CA, M0_trans, cos_fa):
    """grid = (T,); one (R, L) time frame per step."""
    t = pl.program_id(0)
    kt = mult_ref[2 * t]        # K_time[t]
    cp = mult_ref[2 * t + 1]    # Cp[t]

    # param -> concentration: CA[t] = K_time[t]*x[0] + Cp[t]*x[1]   (mult is real)
    ca_r = kt * xr_ref[0] + cp * xr_ref[1]
    ca_i = kt * xi_ref[0] + cp * xi_ref[1]

    # E1CA = exp(-TR * (R1 + R1CA * CA))   (complex exponential)
    er = -TR * (R1 + R1CA * ca_r)
    ei = (-TR * R1CA) * ca_i
    mag = jnp.exp(er)
    e_r = mag * jnp.cos(ei)
    e_i = mag * jnp.sin(ei)

    # CA_trans = M0_trans * (1 - E1CA) / (1 - cos(FA) * E1CA)   (complex division, exact)
    nr = 1.0 - e_r
    ni = -e_i
    dr = 1.0 - cos_fa * e_r
    di = -cos_fa * e_i
    scale = M0_trans / (dr * dr + di * di)
    ct_r = scale * (nr * dr + ni * di)
    ct_i = scale * (ni * dr - nr * di)

    # y = CA_trans + (sig_baseline - M_steady)   (baseline offset pre-folded host-side)
    yr_ref[0] = ct_r + base_ref[...]
    yi_ref[0] = ct_i


# ----------------------------------------------------------------------------
# Kernel 2: coil-sensitivity multiply  sMaps[t, c] = csm[c] * y[t]
# ----------------------------------------------------------------------------
def _dce_coil_kernel(yr_ref, yi_ref, csr_ref, csi_ref, out_r_ref, out_i_ref):
    """grid = (n_chunks, T); csm chunk stays VMEM-resident across the inner T axis."""
    y_r = yr_ref[...]          # (1, R, L) -> implicit broadcast against (c_block, R, L)
    y_i = yi_ref[...]
    c_r = csr_ref[...]
    c_i = csi_ref[...]
    out_r_ref[0] = y_r * c_r - y_i * c_i
    out_i_ref[0] = y_r * c_i + y_i * c_r


# ----------------------------------------------------------------------------
# VMEM planning (generation-aware)
# ----------------------------------------------------------------------------
def _vmem_plan():
    """Return (tile_budget_bytes, vmem_limit_bytes) derived from the chip's VMEM."""
    try:
        cap = int(pltpu.get_tpu_info().vmem_capacity_bytes)
    except Exception:
        cap = 64 << 20                      # conservative fallback (v7x per-TC size)
    tile_budget = int(cap * 0.60)           # what the coil-tiling plan may consume
    vmem_limit = int(cap * 0.75)            # headroom for Mosaic-internal scratch
    return tile_budget, vmem_limit


def _plan_coil_tiling(C, n_spatial, budget_bytes):
    """Choose (c_block, csm_buffer_count) for the coil-multiply kernel.

    Per grid step (f32, n_spatial = R*L elements per plane):
      y_r/y_i blocks      : 2 planes, double-buffered
      csm_r/csm_i chunk   : 2 * c_block planes, 1 buffer if fully resident else 2
      out_r/out_i block   : 2 * c_block planes, double-buffered
    """
    plane = n_spatial * 4
    y_cost = 4 * plane
    # Preferred: whole csm resident (single-buffered, constant block index).
    if y_cost + C * plane * (2 * 1 + 4) <= budget_bytes:
        return C, 1
    per_coil = plane * (2 * 2 + 4)          # csm double-buffered + out double-buffered
    cmax = max(1, (budget_bytes - y_cost) // per_coil)
    for cand in range(min(cmax, C), 0, -1):
        if C % cand == 0:
            return cand, 2
    return 1, 2


# ----------------------------------------------------------------------------
# pallas_call wrappers
# ----------------------------------------------------------------------------
def dce_signal_pallas(mult_flat, x_r, x_i, base_off, consts, vmem_limit):
    T = mult_flat.shape[0] // 2
    _, R, L = x_r.shape
    kernel = functools.partial(_dce_signal_kernel, **consts)
    return pl.pallas_call(
        kernel,
        out_shape=(jax.ShapeDtypeStruct((T, R, L), jnp.float32),
                   jax.ShapeDtypeStruct((T, R, L), jnp.float32)),
        grid=(T,),
        in_specs=[
            pl.BlockSpec(memory_space=pltpu.MemorySpace.SMEM),               # mult flat [2T]
            pl.BlockSpec((2, R, L), lambda t: (0, 0, 0),
                         pipeline_mode=pl.Buffered(1)),                      # x real (resident)
            pl.BlockSpec((2, R, L), lambda t: (0, 0, 0),
                         pipeline_mode=pl.Buffered(1)),                      # x imag (resident)
            pl.BlockSpec((R, L), lambda t: (0, 0),
                         pipeline_mode=pl.Buffered(1)),                      # baseline - M_steady
        ],
        out_specs=(pl.BlockSpec((1, R, L), lambda t: (t, 0, 0)),
                   pl.BlockSpec((1, R, L), lambda t: (t, 0, 0))),
        compiler_params=pltpu.CompilerParams(
            dimension_semantics=("parallel",),
            vmem_limit_bytes=vmem_limit),
    )(mult_flat, x_r, x_i, base_off)


def dce_coil_mult_pallas(y_r, y_i, csm_r, csm_i, c_block, csm_bufs, vmem_limit):
    T, R, L = y_r.shape
    C = csm_r.shape[0]
    n_chunks = C // c_block
    if csm_bufs == 1:
        # fully resident (or slowly varying) csm chunk: single buffer frees VMEM
        csm_spec = pl.BlockSpec((c_block, R, L), lambda cb, t: (cb, 0, 0),
                                pipeline_mode=pl.Buffered(1))
    else:
        csm_spec = pl.BlockSpec((c_block, R, L), lambda cb, t: (cb, 0, 0))
    return pl.pallas_call(
        _dce_coil_kernel,
        out_shape=(jax.ShapeDtypeStruct((T, C, R, L), jnp.float32),
                   jax.ShapeDtypeStruct((T, C, R, L), jnp.float32)),
        grid=(n_chunks, T),
        in_specs=[
            pl.BlockSpec((1, R, L), lambda cb, t: (t, 0, 0)),                # y real, per-t
            pl.BlockSpec((1, R, L), lambda cb, t: (t, 0, 0)),                # y imag, per-t
            csm_spec,                                                        # csm real chunk
            csm_spec,                                                        # csm imag chunk
        ],
        out_specs=(pl.BlockSpec((1, c_block, R, L), lambda cb, t: (t, cb, 0, 0)),
                   pl.BlockSpec((1, c_block, R, L), lambda cb, t: (t, cb, 0, 0))),
        # Both axes are stateless (pure multiply, every output block written exactly once),
        # so both are "parallel": v7x's 2 TensorCores both stream even when n_chunks == 1.
        compiler_params=pltpu.CompilerParams(
            dimension_semantics=("parallel", "parallel"),
            vmem_limit_bytes=vmem_limit),
    )(y_r, y_i, csm_r, csm_i)


def fft2c(x):
    # TODO(synk): centered 2-D FFT has no Pallas primitive; done with jnp.fft (XLA).
    x = jnp.fft.ifftshift(x, axes=(-2, -1))
    x = jnp.fft.fft2(x, axes=(-2, -1), norm="ortho")
    return jnp.fft.fftshift(x, axes=(-2, -1))


def arterial_input_function(sample_time):
    # deterministic synthetic AIF (gamma-variate shaped), stand-in for dce.arterial_input_function
    tau = 30.0
    return (6.0 * (sample_time / tau) * np.exp(1.0 - sample_time / tau)).astype(np.float32)


# ----------------------------------------------------------------------------
# Module wrapper (mirrors the torch DCE forward, x_iscomplex=True path)
# ----------------------------------------------------------------------------
class DCEPallas:
    def __init__(self, ishape, sample_time, sig_baseline, csm, Umask,
                 undersampled=True, R1=1.0, M0=5.0, R1CA=4.39, FA=15.0, TR=0.006):
        # ishape is the *complex* shape [2, 1, H, W]
        self.ishape = list(ishape)
        self.undersampled = undersampled
        H, W = int(ishape[-2]), int(ishape[-1])
        self.H, self.W = H, W
        HW = H * W
        # lane-dense spatial folding: last dim a multiple of 128 when possible.
        # (For tiny images R = HW//128 < 8 the sublanes are under-used; folding the coil
        #  axis into sublanes would fix it but is irrelevant for realistic image sizes.)
        L = 128 if HW % 128 == 0 else HW
        R = HW // L
        self.R, self.L = R, L

        sample_time = np.squeeze(np.asarray(sample_time, np.float32))
        fa_rad = FA * math.pi / 180.0
        m0_trans = M0 * math.sin(fa_rad)
        e1 = math.exp(-TR * R1)
        m_steady = m0_trans * (1.0 - e1) / (1.0 - e1 * math.cos(fa_rad))
        self.consts = dict(TR=float(TR), R1=float(R1), R1CA=float(R1CA),
                           M0_trans=float(m0_trans), cos_fa=float(math.cos(fa_rad)),
                           M_steady=float(m_steady))
        # kernel only needs these (M_steady folded into the baseline offset)
        self.kernel_consts = dict(TR=float(TR), R1=float(R1), R1CA=float(R1CA),
                                  M0_trans=float(m0_trans), cos_fa=float(math.cos(fa_rad)))

        # _param_to_conc setup:  mult = stack([cumsum(Cp) * dt[-1], Cp], axis=1)
        Cp = arterial_input_function(sample_time)
        t1 = sample_time[sample_time != 0]
        dt = np.diff(t1)
        K_time = np.cumsum(Cp) * dt[-1]
        mult_np = np.stack([K_time, Cp], axis=1).astype(np.float32)       # [T, 2]
        self.mult = jnp.asarray(mult_np)                                  # reference
        self.mult_flat = jnp.asarray(mult_np.reshape(-1))                 # [2T] 1-D SMEM

        sig_baseline = np.asarray(sig_baseline, np.float32)
        self.sig_baseline = jnp.asarray(sig_baseline)                     # [H, W] reference
        self.base_off = jnp.asarray((sig_baseline - m_steady).reshape(R, L))

        csm = jnp.asarray(csm)                                            # [C, H, W] complex
        self.csm = csm                                                    # reference
        self.C = int(csm.shape[0])
        self.csm_r = jnp.real(csm).astype(jnp.float32).reshape(self.C, R, L)
        self.csm_i = jnp.imag(csm).astype(jnp.float32).reshape(self.C, R, L)

        self.Umask = jnp.asarray(Umask, jnp.float32)                      # [T, H, W]

        tile_budget, self.vmem_limit = _vmem_plan()
        self.c_block, self.csm_bufs = _plan_coil_tiling(self.C, HW, tile_budget)

    def __call__(self, x):
        # x: [2, 1, H, W, 2] float32 (last dim = real/imag)
        P = self.ishape[0]
        H, W, R, L = self.H, self.W, self.R, self.L
        x_r = x[..., 0].reshape(P, R, L)
        x_i = x[..., 1].reshape(P, R, L)

        # 1) per-time-frame signal model (tiny prologue kernel)
        y_r, y_i = dce_signal_pallas(self.mult_flat, x_r, x_i, self.base_off,
                                     self.kernel_consts, self.vmem_limit)   # [T, R, L]

        # 2) coil-sensitivity multiply with csm chunks resident across the time loop
        sm_r, sm_i = dce_coil_mult_pallas(y_r, y_i, self.csm_r, self.csm_i,
                                          self.c_block, self.csm_bufs,
                                          self.vmem_limit)                  # [T, C, R, L]

        T = self.mult_flat.shape[0] // 2
        # TODO(synk): Pallas TPU cannot emit complex64; this recombine is one extra
        # fused XLA pass feeding the FFT custom call.
        s_maps = jax.lax.complex(sm_r, sm_i).reshape(T, self.C, H, W)
        f = fft2c(s_maps)

        if self.undersampled:
            # single fused XLA pass; a Pallas kernel here only adds re/im split HBM traffic
            return self.Umask[:, None, :, :] * f
        # identity mask = ones -> no-op multiply
        return f


# ----------------------------------------------------------------------------
# Pure-JAX reference (mirrors the torch forward exactly)
# ----------------------------------------------------------------------------
def dce_reference(x, mult, sig_baseline, csm, Umask, consts, ishape, undersampled):
    x_c = x[..., 0] + 1j * x[..., 1]                          # [2, 1, H, W]
    xr = x_c.reshape(ishape[0], -1)
    yr = mult.astype(jnp.complex64) @ xr                      # [T, prod(ishape[1:])]
    CA = yr.reshape((mult.shape[0],) + tuple(ishape[1:]))     # [T, 1, H, W]
    E1CA = jnp.exp(-consts["TR"] * (consts["R1"] + consts["R1CA"] * CA))
    CA_trans = consts["M0_trans"] * (1 - E1CA) / (1 - E1CA * consts["cos_fa"])
    y = CA_trans + sig_baseline - consts["M_steady"]          # [T, 1, H, W]
    s_maps = csm * y                                          # [T, C, H, W]
    f = fft2c(s_maps)
    if undersampled:
        return Umask[:, None, :, :] * f
    return f


# ----------------------------------------------------------------------------
if __name__ == "__main__":
    key = jax.random.PRNGKey(0)
    k1, k2, k3, k4, k5 = jax.random.split(key, 5)

    T, C, H, W = 8, 4, 16, 16
    N_t0 = 8
    ishape = [2, 1, H, W]                                     # complex ishape

    sample_time_full = 5.0 * (np.arange(T + N_t0, dtype=np.float32) + 1.0)
    sample_time = sample_time_full[N_t0:]                     # [T]

    x = jax.random.normal(k1, (2, 1, H, W, 2), dtype=jnp.float32) * 0.1
    csm = (jax.random.normal(k2, (C, H, W), dtype=jnp.float32)
           + 1j * jax.random.normal(k3, (C, H, W), dtype=jnp.float32)).astype(jnp.complex64) * 0.5
    sig_baseline = jnp.abs(jax.random.normal(k4, (H, W), dtype=jnp.float32)) + 0.5
    Umask_np = (np.asarray(jax.random.uniform(k5, (T, H, W))) > 0.5).astype(np.float32)
    Umask_np = np.fft.ifftshift(Umask_np, axes=(-2, -1))      # as in the original pipeline script

    model = DCEPallas(ishape, sample_time, sig_baseline, csm, Umask_np, undersampled=True)

    y = model(x)
    y = jax.block_until_ready(y)

    y_ref = dce_reference(x, model.mult, model.sig_baseline, model.csm,
                          model.Umask, model.consts, ishape, undersampled=True)
    y_ref = jax.block_until_ready(y_ref)

    np.testing.assert_allclose(np.asarray(y), np.asarray(y_ref), rtol=5e-3, atol=5e-3)
    assert y.shape == (T, C, H, W) and y.dtype == jnp.complex64
    print("KERNEL_OK")
</pallas_src>

<mosaic_0001>
module attributes {stable_mosaic.version = 11 : i64} {
  func.func @_dce_signal_kernel(%arg0: i32, %arg1: memref<16xf32, #tpu.memory_space<smem>>, %arg2: memref<2x2x128xf32, #tpu.memory_space<vmem>>, %arg3: memref<2x2x128xf32, #tpu.memory_space<vmem>>, %arg4: memref<2x128xf32, #tpu.memory_space<vmem>>, %arg5: memref<1x2x128xf32, #tpu.memory_space<vmem>>, %arg6: memref<1x2x128xf32, #tpu.memory_space<vmem>>) attributes {dimension_semantics = [#tpu.dimension_semantics<parallel>], iteration_bounds = array<i64: 8>, scalar_prefetch = 0 : i64, scratch_operands = 0 : i64, tpu.core_type = #tpu.core_type<tc>, window_params = [{transform_indices = @transform_0, window_bounds = array<i64: 16>}, {pipeline_mode = #tpu.pipeline_mode<synchronous>, transform_indices = @transform_1, window_bounds = array<i64: 2, 2, 128>}, {pipeline_mode = #tpu.pipeline_mode<synchronous>, transform_indices = @transform_2, window_bounds = array<i64: 2, 2, 128>}, {pipeline_mode = #tpu.pipeline_mode<synchronous>, transform_indices = @transform_3, window_bounds = array<i64: 2, 128>}, {transform_indices = @transform_4, window_bounds = array<i64: 1, 2, 128>}, {transform_indices = @transform_5, window_bounds = array<i64: 1, 2, 128>}]} {
    %c2_i32 = arith.constant 2 : i32
    %0 = arith.muli %c2_i32, %arg0 : i32
    %1 = arith.index_cast %0 : i32 to index
    %2 = memref.load %arg1[%1] : memref<16xf32, #tpu.memory_space<smem>>
    %c2_i32_0 = arith.constant 2 : i32
    %3 = arith.muli %c2_i32_0, %arg0 : i32
    %c1_i32 = arith.constant 1 : i32
    %4 = arith.addi %3, %c1_i32 : i32
    %5 = arith.index_cast %4 : i32 to index
    %6 = memref.load %arg1[%5] : memref<16xf32, #tpu.memory_space<smem>>
    %c0 = arith.constant 0 : index
    %c0_1 = arith.constant 0 : index
    %c0_2 = arith.constant 0 : index
    %7 = vector.load %arg2[%c0, %c0_1, %c0_2] : memref<2x2x128xf32, #tpu.memory_space<vmem>>, vector<1x2x128xf32>
    %8 = vector.shape_cast %7 : vector<1x2x128xf32> to vector<2x128xf32>
    %9 = vector.broadcast %2 : f32 to vector<2x128xf32>
    %10 = arith.mulf %9, %8 : vector<2x128xf32>
    %c1 = arith.constant 1 : index
    %c0_3 = arith.constant 0 : index
    %c0_4 = arith.constant 0 : index
    %11 = vector.load %arg2[%c1, %c0_3, %c0_4] : memref<2x2x128xf32, #tpu.memory_space<vmem>>, vector<1x2x128xf32>
    %12 = vector.shape_cast %11 : vector<1x2x128xf32> to vector<2x128xf32>
    %13 = vector.broadcast %6 : f32 to vector<2x128xf32>
    %14 = arith.mulf %13, %12 : vector<2x128xf32>
    %15 = arith.addf %10, %14 : vector<2x128xf32>
    %c0_5 = arith.constant 0 : index
    %c0_6 = arith.constant 0 : index
    %c0_7 = arith.constant 0 : index
    %16 = vector.load %arg3[%c0_5, %c0_6, %c0_7] : memref<2x2x128xf32, #tpu.memory_space<vmem>>, vector<1x2x128xf32>
    %17 = vector.shape_cast %16 : vector<1x2x128xf32> to vector<2x128xf32>
    %18 = vector.broadcast %2 : f32 to vector<2x128xf32>
    %19 = arith.mulf %18, %17 : vector<2x128xf32>
    %c1_8 = arith.constant 1 : index
    %c0_9 = arith.constant 0 : index
    %c0_10 = arith.constant 0 : index
    %20 = vector.load %arg3[%c1_8, %c0_9, %c0_10] : memref<2x2x128xf32, #tpu.memory_space<vmem>>, vector<1x2x128xf32>
    %21 = vector.shape_cast %20 : vector<1x2x128xf32> to vector<2x128xf32>
    %22 = vector.broadcast %6 : f32 to vector<2x128xf32>
    %23 = arith.mulf %22, %21 : vector<2x128xf32>
    %24 = arith.addf %19, %23 : vector<2x128xf32>
    %cst = arith.constant 4.390000e+00 : f32
    %25 = vector.broadcast %cst : f32 to vector<2x128xf32>
    %26 = arith.mulf %25, %15 : vector<2x128xf32>
    %cst_11 = arith.constant 1.000000e+00 : f32
    %27 = vector.broadcast %cst_11 : f32 to vector<2x128xf32>
    %28 = arith.addf %27, %26 : vector<2x128xf32>
    %cst_12 = arith.constant -6.000000e-03 : f32
    %29 = vector.broadcast %cst_12 : f32 to vector<2x128xf32>
    %30 = arith.mulf %29, %28 : vector<2x128xf32>
    %cst_13 = arith.constant -2.634000e-02 : f32
    %31 = vector.broadcast %cst_13 : f32 to vector<2x128xf32>
    %32 = arith.mulf %31, %24 : vector<2x128xf32>
    %33 = math.exp %30 : vector<2x128xf32>
    %34 = math.cos %32 : vector<2x128xf32>
    %35 = arith.mulf %33, %34 : vector<2x128xf32>
    %36 = math.sin %32 : vector<2x128xf32>
    %37 = arith.mulf %33, %36 : vector<2x128xf32>
    %cst_14 = arith.constant 1.000000e+00 : f32
    %38 = vector.broadcast %cst_14 : f32 to vector<2x128xf32>
    %39 = arith.subf %38, %35 : vector<2x128xf32>
    %cst_15 = arith.constant 0.000000e+00 : f32
    %40 = vector.broadcast %cst_15 : f32 to vector<2x128xf32>
    %41 = arith.subf %40, %37 : vector<2x128xf32>
    %cst_16 = arith.constant 0.965925812 : f32
    %42 = vector.broadcast %cst_16 : f32 to vector<2x128xf32>
    %43 = arith.mulf %42, %35 : vector<2x128xf32>
    %cst_17 = arith.constant 1.000000e+00 : f32
    %44 = vector.broadcast %cst_17 : f32 to vector<2x128xf32>
    %45 = arith.subf %44, %43 : vector<2x128xf32>
    %cst_18 = arith.constant -0.965925812 : f32
    %46 = vector.broadcast %cst_18 : f32 to vector<2x128xf32>
    %47 = arith.mulf %46, %37 : vector<2x128xf32>
    %48 = arith.mulf %45, %45 : vector<2x128xf32>
    %49 = arith.mulf %47, %47 : vector<2x128xf32>
    %50 = arith.addf %48, %49 : vector<2x128xf32>
    %cst_19 = arith.constant 1.29409528 : f32
    %51 = vector.broadcast %cst_19 : f32 to vector<2x128xf32>
    %52 = arith.divf %51, %50 : vector<2x128xf32>
    %53 = arith.mulf %39, %45 : vector<2x128xf32>
    %54 = arith.mulf %41, %47 : vector<2x128xf32>
    %55 = arith.addf %53, %54 : vector<2x128xf32>
    %56 = arith.mulf %52, %55 : vector<2x128xf32>
    %57 = arith.mulf %41, %45 : vector<2x128xf32>
    %58 = arith.mulf %39, %47 : vector<2x128xf32>
    %59 = arith.subf %57, %58 : vector<2x128xf32>
    %60 = arith.mulf %52, %59 : vector<2x128xf32>
    %c0_20 = arith.constant 0 : index
    %c0_21 = arith.constant 0 : index
    %61 = vector.load %arg4[%c0_20, %c0_21] : memref<2x128xf32, #tpu.memory_space<vmem>>, vector<2x128xf32>
    %62 = arith.addf %56, %61 : vector<2x128xf32>
    %c0_22 = arith.constant 0 : index
    %c0_23 = arith.constant 0 : index
    %c0_24 = arith.constant 0 : index
    %63 = vector.load %arg5[%c0_22, %c0_23, %c0_24] : memref<1x2x128xf32, #tpu.memory_space<vmem>>, vector<1x2x128xf32>
    %64 = vector.shape_cast %63 : vector<1x2x128xf32> to vector<2x128xf32>
    %65 = vector.shape_cast %62 : vector<2x128xf32> to vector<1x2x128xf32>
    tpu.vector_store %arg5[%c0_22, %c0_23, %c0_24], %65 {strides = array<i32>} : memref<1x2x128xf32, #tpu.memory_space<vmem>>, vector<1x2x128xf32>,
    %c0_25 = arith.constant 0 : index
    %c0_26 = arith.constant 0 : index
    %c0_27 = arith.constant 0 : index
    %66 = vector.load %arg6[%c0_25, %c0_26, %c0_27] : memref<1x2x128xf32, #tpu.memory_space<vmem>>, vector<1x2x128xf32>
    %67 = vector.shape_cast %66 : vector<1x2x128xf32> to vector<2x128xf32>
    %68 = vector.shape_cast %60 : vector<2x128xf32> to vector<1x2x128xf32>
    tpu.vector_store %arg6[%c0_25, %c0_26, %c0_27], %68 {strides = array<i32>} : memref<1x2x128xf32, #tpu.memory_space<vmem>>, vector<1x2x128xf32>,
    return
  }
  func.func @transform_0(%arg0: i32) -> i32 {
    %c0_i32 = arith.constant 0 : i32
    %c0_i32_0 = arith.constant 0 : i32
    return %c0_i32 : i32
  }
  func.func @transform_1(%arg0: i32) -> (i32, i32, i32) {
    %c0_i32 = arith.constant 0 : i32
    %c0_i32_0 = arith.constant 0 : i32
    %c0_i32_1 = arith.constant 0 : i32
    %c0_i32_2 = arith.constant 0 : i32
    return %c0_i32, %c0_i32_0, %c0_i32_1 : i32, i32, i32
  }
  func.func @transform_2(%arg0: i32) -> (i32, i32, i32) {
    %c0_i32 = arith.constant 0 : i32
    %c0_i32_0 = arith.constant 0 : i32
    %c0_i32_1 = arith.constant 0 : i32
    %c0_i32_2 = arith.constant 0 : i32
    return %c0_i32, %c0_i32_0, %c0_i32_1 : i32, i32, i32
  }
  func.func @transform_3(%arg0: i32) -> (i32, i32) {
    %c0_i32 = arith.constant 0 : i32
    %c0_i32_0 = arith.constant 0 : i32
    %c0_i32_1 = arith.constant 0 : i32
    return %c0_i32, %c0_i32_0 : i32, i32
  }
  func.func @transform_4(%arg0: i32) -> (i32, i32, i32) {
    %c0_i32 = arith.constant 0 : i32
    %c0_i32_0 = arith.constant 0 : i32
    %c0_i32_1 = arith.constant 0 : i32
    return %arg0, %c0_i32, %c0_i32_0 : i32, i32, i32
  }
  func.func @transform_5(%arg0: i32) -> (i32, i32, i32) {
    %c0_i32 = arith.constant 0 : i32
    %c0_i32_0 = arith.constant 0 : i32
    %c0_i32_1 = arith.constant 0 : i32
    return %arg0, %c0_i32, %c0_i32_0 : i32, i32, i32
  }
}

</mosaic_0001>

<llo_original>
// kernel: tpu_custom_call.1
$region0: #{tpu_custom_call.1}
  #allocation0 [shape = 'u32[]', space=smem, size = 0x4, offset = 0x4, fixed_abs, tag = 'smem constant byte address 0x4 - core index']
  #allocation1 [shape = 'u32[144,128]{1,0:T(1,128)}', space=vmem, size = 0x12000, scoped, tag = 'internal scratch']
  %s0 = inlined_call_operand.hbm [shape: f32[16], index: 0, kind: input, shape index: {}]
  %s1 = inlined_call_operand.hbm [shape: f32[2,2,128], index: 1, kind: input, shape index: {}]
  %s2 = inlined_call_operand.vmem [shape: f32[2,2,128], index: 2, kind: input, shape index: {}]
  %s3 = inlined_call_operand.vmem [shape: f32[2,128], index: 3, kind: input, shape index: {}]
  %s4 = inlined_call_operand.hbm [shape: f32[8,2,128], index: 4, kind: output, shape index: {0}]
  %s5 = inlined_call_operand.hbm [shape: f32[8,2,128], index: 5, kind: output, shape index: {1}]
  %6 = xla_tuple %s4, %s5
  %s7 = sld [smem:[#allocation0]]
  $region65: #{tpu_custom_call.1} parent=0
    _
  %s9 = ssub.s32 1, %s7
  %s10 = scalar_select 0, %s9, %s7
  $region1: #{tpu_custom_call.1} parent=0
    #allocation2 [shape = 'u8[512]{0}', space=smem, size = 0x200, scoped, tag = 'input window, operand 0, single buffered']
    #allocation3 [shape = 's32[2]{0}', space=sflag, size = 0x8, scoped, tag = 'scoped memory for tpu_custom_call.1']
    #allocation4 [shape = 's32[2]{0}', space=sflag, size = 0x8, scoped, tag = 'scoped memory for tpu_custom_call.1']
    #allocation5 [shape = 's32[2]{0}', space=sflag, size = 0x8, scoped, tag = 'scoped memory for tpu_custom_call.1']
    #allocation6 [shape = 'u8[2048]{0}', space=vmem, size = 0x800, scoped, tag = 'input window, operand 1, single buffered']
    #allocation7 [shape = 'u8[2048]{0}', space=vmem, size = 0x800, scoped, tag = 'output window, operand 0']
    #allocation8 [shape = 'u8[2048]{0}', space=vmem, size = 0x800, scoped, tag = 'output window, operand 1']
    #allocation9 [shape = 's32[2]{0}', space=sflag, size = 0x8, scoped, tag = 'scoped memory for tpu_custom_call.1']
    %11 = vsyncpa [#allocation5], 0
    %12 = vsyncpa [#allocation3], 0
    %13 = vsyncpa [#allocation4], 0
    %s14 = scalar_lea.sflag [#allocation4], 1
    %15 = vsyncpa %s14, 0
    %16 = vsyncpa [#allocation9], 0
    %s17 = scalar_lea.sflag [#allocation9], 1
    %18 = vsyncpa %s17, 0
    loop: start=0, step=1, limit=10
    $region2: #{tpu_custom_call.1} parent=1 // loop_pre_header
      _
    $region3: #{tpu_custom_call.1} parent=1 // loop_header
      %s20 = sphi 0, %s24
      %p21 = scmp.ge.s32.totalorder %s20, 10
      %s28 = sphi 0, %s28
      %s30 = sphi 0, %s28
      %s31 = sphi 0, %s30
      %s45 = sphi 0, %s31
      %s49 = sphi 0, %s49
      %s51 = sphi 0, %s49
      %s52 = sphi 0, %s51
      %s66 = sphi 0, %s52
      %s70 = sphi 0, %s70
      %s72 = sphi 0, %s70
      %s73 = sphi 0, %s72
      %s87 = sphi 0, %s73
      %s91 = sphi 0, %s91
      %s93 = sphi 0, %s91
      %s94 = sphi 0, %s93
      %s108 = sphi 0, %s94
      %s114 = sphi 0, %s116
      %s117 = sphi 0, %s114
      %s118 = sphi 0, %s117
      %s134 = sphi 0, %s118
      %s140 = sphi 0, %s142
      %s143 = sphi 0, %s140
      %s144 = sphi 0, %s143
      %s160 = sphi 0, %s144
    $region4: #{tpu_custom_call.1} parent=1 // loop_header_branch
      %23 = sbr.rel (%p21) target = $region8
    $region5: #{tpu_custom_call.1} parent=1 // loop_body
      %s25 = ssub.s32 %s20, 1
      %s26 = ssub.s32 %s20, 2
      %s27 = sadd.s32 %s20, 1
      %s29 = sadd.s32 %s28, 1
      %p32 = scmp.eq.s32.totalorder %s20, 7
      %p33 = scmp.ne.s32.totalorder %s28, %s30
      %p34 = scmp.eq.s32.totalorder %s20, 0
      %p35 = por %p33, %p34
      %p36 = scmp.ne.s32.totalorder %s28, %s30
      %p37 = scmp.eq.s32.totalorder %s25, 7
      %p38 = por %p36, %p37
      %p39 = scmp.ne.s32.totalorder %s30, %s31
      %p40 = scmp.eq.s32.totalorder %s25, 0
      %p41 = por %p39, %p40
      %p42 = scmp.ne.s32.totalorder %s30, %s31
      %p43 = scmp.eq.s32.totalorder %s26, 7
      %p44 = por %p42, %p43
      %p46 = scmp.ne.s32.totalorder %s31, %s45
      %p47 = scmp.eq.s32.totalorder %s26, 0
      %p48 = por %p46, %p47
      %s50 = sadd.s32 %s49, 1
      %p53 = scmp.eq.s32.totalorder %s20, 7
      %p54 = scmp.ne.s32.totalorder %s49, %s51
      %p55 = scmp.eq.s32.totalorder %s20, 0
      %p56 = por %p54, %p55
      %p57 = scmp.ne.s32.totalorder %s49, %s51
      %p58 = scmp.eq.s32.totalorder %s25, 7
      %p59 = por %p57, %p58
      %p60 = scmp.ne.s32.totalorder %s51, %s52
      %p61 = scmp.eq.s32.totalorder %s25, 0
      %p62 = por %p60, %p61
      %p63 = scmp.ne.s32.totalorder %s51, %s52
      %p64 = scmp.eq.s32.totalorder %s26, 7
      %p65 = por %p63, %p64
      %p67 = scmp.ne.s32.totalorder %s52, %s66
      %p68 = scmp.eq.s32.totalorder %s26, 0
      %p69 = por %p67, %p68
      %s71 = sadd.s32 %s70, 1
      %p74 = scmp.eq.s32.totalorder %s20, 7
      %p75 = scmp.ne.s32.totalorder %s70, %s72
      %p76 = scmp.eq.s32.totalorder %s20, 0
      %p77 = por %p75, %p76
      %p78 = scmp.ne.s32.totalorder %s70, %s72
      %p79 = scmp.eq.s32.totalorder %s25, 7
      %p80 = por %p78, %p79
      %p81 = scmp.ne.s32.totalorder %s72, %s73
      %p82 = scmp.eq.s32.totalorder %s25, 0
      %p83 = por %p81, %p82
      %p84 = scmp.ne.s32.totalorder %s72, %s73
      %p85 = scmp.eq.s32.totalorder %s26, 7
      %p86 = por %p84, %p85
      %p88 = scmp.ne.s32.totalorder %s73, %s87
      %p89 = scmp.eq.s32.totalorder %s26, 0
      %p90 = por %p88, %p89
      %s92 = sadd.s32 %s91, 1
      %p95 = scmp.eq.s32.totalorder %s20, 7
      %p96 = scmp.ne.s32.totalorder %s91, %s93
      %p97 = scmp.eq.s32.totalorder %s20, 0
      %p98 = por %p96, %p97
      %p99 = scmp.ne.s32.totalorder %s91, %s93
      %p100 = scmp.eq.s32.totalorder %s25, 7
      %p101 = por %p99, %p100
      %p102 = scmp.ne.s32.totalorder %s93, %s94
      %p103 = scmp.eq.s32.totalorder %s25, 0
      %p104 = por %p102, %p103
      %p105 = scmp.ne.s32.totalorder %s93, %s94
      %p106 = scmp.eq.s32.totalorder %s26, 7
      %p107 = por %p105, %p106
      %p109 = scmp.ne.s32.totalorder %s94, %s108
      %p110 = scmp.eq.s32.totalorder %s26, 0
      %p111 = por %p109, %p110
      %s112 = ssub.s32 %s20, %s27
      %p113 = scmp.eq.s32.totalorder %s112, 0
      %s115 = sadd.s32 %s114, 1
      %s116 = scalar_select %p113, %s114, %s115
      %p119 = pneg %p113
      %p120 = scmp.eq.s32.totalorder %s20, 7
      %p121 = por %p119, %p120
      %p122 = scmp.ne.s32.totalorder %s114, %s117
      %p123 = scmp.eq.s32.totalorder %s20, 0
      %p124 = por %p122, %p123
      %p125 = scmp.ne.s32.totalorder %s114, %s117
      %p126 = scmp.eq.s32.totalorder %s25, 7
      %p127 = por %p125, %p126
      %p128 = scmp.ne.s32.totalorder %s117, %s118
      %p129 = scmp.eq.s32.totalorder %s25, 0
      %p130 = por %p128, %p129
      %p131 = scmp.ne.s32.totalorder %s117, %s118
      %p132 = scmp.eq.s32.totalorder %s26, 7
      %p133 = por %p131, %p132
      %p135 = scmp.ne.s32.totalorder %s118, %s134
      %p136 = scmp.eq.s32.totalorder %s26, 0
      %p137 = por %p135, %p136
      %s138 = ssub.s32 %s20, %s27
      %p139 = scmp.eq.s32.totalorder %s138, 0
      %s141 = sadd.s32 %s140, 1
      %s142 = scalar_select %p139, %s140, %s141
      %p145 = pneg %p139
      %p146 = scmp.eq.s32.totalorder %s20, 7
      %p147 = por %p145, %p146
      %p148 = scmp.ne.s32.totalorder %s140, %s143
      %p149 = scmp.eq.s32.totalorder %s20, 0
      %p150 = por %p148, %p149
      %p151 = scmp.ne.s32.totalorder %s140, %s143
      %p152 = scmp.eq.s32.totalorder %s25, 7
      %p153 = por %p151, %p152
      %p154 = scmp.ne.s32.totalorder %s143, %s144
      %p155 = scmp.eq.s32.totalorder %s25, 0
      %p156 = por %p154, %p155
      %p157 = scmp.ne.s32.totalorder %s143, %s144
      %p158 = scmp.eq.s32.totalorder %s26, 7
      %p159 = por %p157, %p158
      %p161 = scmp.ne.s32.totalorder %s144, %s160
      %p162 = scmp.eq.s32.totalorder %s26, 0
      %p163 = por %p161, %p162
      %p164 = scmp.le.s32.totalorder 1, %s20
      %p165 = scmp.lt.s32.totalorder %s20, 9
      %p166 = pnand %p164, %p165
      %p167 = pneg %p166
      // Predicated region
      $region9: #{tpu_custom_call.1} parent=5 // pred_check
        _
      $region10: #{tpu_custom_call.1} parent=5 // pred_check_branch
        %169 = sbr.rel (%p166) target = $region12
      $region11: #{tpu_custom_call.1} parent=5 // pred_region
        %s170 = ssub.s32 %s20, 1
        // Predicated region
        $region13: #{tpu_custom_call.1} parent=11 // pred_check
          %p171 = pneg %p41
        $region14: #{tpu_custom_call.1} parent=11 // pred_check_branch
          %173 = sbr.rel (%p171) target = $region16
        $region15: #{tpu_custom_call.1} parent=11 // pred_region
          %s175 = ssub.s32 16, 16
          %176 = vsyncadd [#allocation5], %s175
          %179 = dma.hbm_to_smem %s0, 16, [#allocation2], [#allocation5]
        $region16: #{tpu_custom_call.1} parent=11 // pred_fallthru
          _
        // Predicated region
        $region17: #{tpu_custom_call.1} parent=11 // pred_check
          %p180 = pneg %p62
        $region18: #{tpu_custom_call.1} parent=11 // pred_check_branch
          %182 = sbr.rel (%p180) target = $region20
        $region19: #{tpu_custom_call.1} parent=11 // pred_region
          %s184 = ssub.s32 64, 64
          %185 = vsyncadd [#allocation3], %s184
          %s186 = sshll.u32 [#allocation6], 4
          %s187 = int_to_ptr.vmem [resolvable:$true] %s186
          %192 = dma.hbm_to_vmem [thread:$0]  %s1, 64, %s187, [#allocation3], 32, 32, 2
        $region20: #{tpu_custom_call.1} parent=11 // pred_fallthru
          _
        // Predicated region
        $region21: #{tpu_custom_call.1} parent=11 // pred_check
          %p193 = pneg %p83
        $region22: #{tpu_custom_call.1} parent=11 // pred_check_branch
          %195 = sbr.rel (%p193) target = $region24
        $region23: #{tpu_custom_call.1} parent=11 // pred_region
          _
        $region24: #{tpu_custom_call.1} parent=11 // pred_fallthru
          _
        // Predicated region
        $region25: #{tpu_custom_call.1} parent=11 // pred_check
          %p196 = pneg %p104
        $region26: #{tpu_custom_call.1} parent=11 // pred_check_branch
          %198 = sbr.rel (%p196) target = $region28
        $region27: #{tpu_custom_call.1} parent=11 // pred_region
          _
        $region28: #{tpu_custom_call.1} parent=11 // pred_fallthru
          _
      $region12: #{tpu_custom_call.1} parent=5 // pred_fallthru
        _
      %p199 = scmp.lt.s32.totalorder %s20, 8
      // Predicated region
      $region29: #{tpu_custom_call.1} parent=5 // pred_check
        %p200 = pneg %p199
      $region30: #{tpu_custom_call.1} parent=5 // pred_check_branch
        %202 = sbr.rel (%p200) target = $region32
      $region31: #{tpu_custom_call.1} parent=5 // pred_region
        _
      $region32: #{tpu_custom_call.1} parent=5 // pred_fallthru
        _
      %p203 = scmp.le.s32.totalorder 1, %s20
      %p204 = scmp.lt.s32.totalorder %s20, 9
      %p205 = pnand %p203, %p204
      %p206 = pneg %p205
      // Predicated region
      $region33: #{tpu_custom_call.1} parent=5 // pred_check
        _
      $region34: #{tpu_custom_call.1} parent=5 // pred_check_branch
        %208 = sbr.rel (%p205) target = $region36
      $region35: #{tpu_custom_call.1} parent=5 // pred_region
        %s209 = ssub.s32 %s20, 1
        // Predicated region
        $region37: #{tpu_custom_call.1} parent=35 // pred_check
          %p210 = pneg %p41
        $region38: #{tpu_custom_call.1} parent=35 // pred_check_branch
          %212 = sbr.rel (%p210) target = $region40
        $region39: #{tpu_custom_call.1} parent=35 // pred_region
          %213 = dma.done [#allocation5], 16
        $region40: #{tpu_custom_call.1} parent=35 // pred_fallthru
          _
        // Predicated region
        $region41: #{tpu_custom_call.1} parent=35 // pred_check
          %p214 = pneg %p62
        $region42: #{tpu_custom_call.1} parent=35 // pred_check_branch
          %216 = sbr.rel (%p214) target = $region44
        $region43: #{tpu_custom_call.1} parent=35 // pred_region
          %217 = dma.done [#allocation3], 64
        $region44: #{tpu_custom_call.1} parent=35 // pred_fallthru
          _
        %218 = sfence
        %p219 = pneg %p41
        %p220 = pneg %p38
        %p221 = pneg %p62
        %p222 = pneg %p59
        %p223 = pneg %p83
        %p224 = pneg %p80
        %p225 = pneg %p104
        %p226 = pneg %p101
        %p227 = pneg %p130
        %p228 = pneg %p127
        %s229 = sand.u32 %s117, 1
        %s230 = scalar_lea.sflag [#allocation4], %s229
        %s231 = sand.u32 %s117, 1
        %s232 = smul.addr %s231, 2
        %s233 = scalar_lea.vmem [#allocation7], %s232
        %p234 = pneg %p156
        %p235 = pneg %p153
        %s236 = sand.u32 %s143, 1
        %s237 = scalar_lea.sflag [#allocation9], %s236
        %s238 = sand.u32 %s143, 1
        %s239 = smul.addr %s238, 2
        %s240 = scalar_lea.vmem [#allocation8], %s239
        %s241 = smul.u32 %s25, 2
        %s242 = sld [smem:[#allocation2 + %s241]]
        %s243 = sadd.s32 %s241, 1
        %s244 = sld [smem:[#allocation2 + %s243]]
        %v245 = vld [vmem:[#allocation6] sm:$0x3]
        %v246 = vstv %s242
        %v247 = vmul.f32 %v246, %v245
        %s248 = scalar_lea.vmem [#allocation6], 2
        %v249 = vld [vmem:[%s248] sm:$0x3]
        %v250 = vstv %s244
        %v251 = vmul.f32 %v250, %v249
        %v252 = vadd.f32 %v247, %v251
        %v253 = vld [vmem:[%s2] sm:$0x3]
        %v254 = vmul.f32 %v246, %v253
        %s255 = scalar_lea.vmem %s2, 2
        %v256 = vld [vmem:[%s255] sm:$0x3]
        %v257 = vmul.f32 %v250, %v256
        %v258 = vadd.f32 %v254, %v257
        %v259 = vmul.f32 %v252, 4.39
        %v260 = vadd.f32 %v259, 1.0
        %v261 = vmul.f32 %v260, -0.006
        %v262 = vmul.f32 %v258, -0.02634
        %v263 = vmul.f32 %v261, 1.442695
        %v264 = vpow.pop %v263
        %v265 = vand.u32 2147483647, %v262
        %vm266 = vcmp.le.f32.partialorder %v265, 0.7853982
        %vm267 = vcmp.lt.s32.totalorder %v262, 0
        %v268 = vand.u32 %v262, 2139095040
        %v269 = vshrl.u32 %v268, 23
        %v270 = vsub.s32 %v269, 127
        %v271 = vand.u32 2147483647, %v262
        %v272 = vand.u32 %v271, 8388607
        %v273 = vor.u32 %v272, 8388608
        %v274 = vsub.s32 0, %v273
        %v275 = vadd.s32 %v270, 1
        %vm276 = vcmp.gt.s32.totalorder %v275, 0
        %v277 = vsel %vm276, %v275, 0
        %v278 = vshrl.u32 %v277, 5
        %v279 = vand.u32 %v277, 31
        %v280 = vsub.s32 32, %v279
        %v281 = vshrl.u32 683565275, %v280
        %v282 = vshll.u32 683565275, %v279
        %v283 = vshrl.u32 2475754826, %v280
        %v284 = vor.u32 %v282, %v283
        %v285 = vshll.u32 2475754826, %v279
        %v286 = vshrl.u32 2131351028, %v280
        %v287 = vor.u32 %v285, %v286
        %v288 = vshll.u32 2131351028, %v279
        %v289 = vshrl.u32 2102212464, %v280
        %v290 = vor.u32 %v288, %v289
        %v291 = vshll.u32 2102212464, %v279
        %v292 = vshrl.u32 920167782, %v280
        %v293 = vor.u32 %v291, %v292
        %v294 = vshll.u32 920167782, %v279
        %v295 = vshrl.u32 1326507024, %v280
        %v296 = vor.u32 %v294, %v295
        %vm297 = vcmp.lt.s32.totalorder %v278, 1
        %vm298 = vcmp.lt.s32.totalorder %v278, 2
        %vm299 = vcmp.lt.s32.totalorder %v278, 3
        %vm300 = vcmp.lt.s32.totalorder %v278, 4
        %v301 = vsel %vm297, %v281, %v284
        %v302 = vsel %vm300, %v290, 2102212464
        %v303 = vsel %vm299, %v287, %v302
        %v304 = vsel %vm298, %v301, %v303
        %v305 = vsel %vm297, %v284, %v287
        %v306 = vsel %vm300, %v293, 920167782
        %v307 = vsel %vm299, %v290, %v306
        %v308 = vsel %vm298, %v305, %v307
        %v309 = vsel %vm297, %v287, %v290
        %v310 = vsel %vm300, %v296, 1326507024
        %v311 = vsel %vm299, %v293, %v310
        %v312 = vsel %vm298, %v309, %v311
        %v313 = vshll.u32 %v273, 8
        %v314 = vmul.u32.u64.compose %v313, %v312
        %v315 = vextract.low.u32 %v314
        %v316 = vextract.high.u32 %v314
        %v317 = vmul.u32.u64.compose %v313, %v308
        %v318 = vextract.low.u32 %v317
        %v319 = vextract.high.u32 %v317
        %v320 = vmul.u32 %v313, %v304
        %v321 = vadd.s32 %v316, %v318
        %vm322 = vc.u32 %v316, %v318
        %v323 = vadd.s32 %v319, 1
        %v324 = vsel %vm322, %v323, %v319
        %v325 = vadd.s32 %v320, %v324
        %v326 = vadd.s32 %v325, 536870912
        %v327 = vshrl.u32 %v326, 30
        %v328 = vshll.u32 %v327, 30
        %v329 = vsub.s32 %v325, %v328
        %vm330 = vcmp.lt.s32.totalorder %v329, 0
        %v331 = vsub.s32 0, %v329
        %v332 = vsel %vm330, %v331, %v329
        %v333 = vclz %v332
        %v334 = vsub.s32 %v333, 2
        %vm335 = vcmp.gt.s32.totalorder 0, %v334
        %v336 = vsel %vm335, 0, %v334
        %v337 = vsub.s32 32, %v336
        %v338 = vshll.u32 %v329, %v336
        %v339 = vshrl.u32 %v321, %v337
        %v340 = vor.u32 %v338, %v339
        %v341 = vsub.s32 4294967266, %v336
        %v342 = vadd.s32 %v341, 127
        %v343 = vshll.u32 %v342, 23
        %v344 = vor.u32 4788187, %v343
        %v345 = vand.u32 2147483647, %v344
        %v347 = vcvt.s32.f32 %v340
        %v348 = vmul.f32 %v347, %v345
        %v349 = vxor.u32 %v348, 2147483648
        %v350 = vsel %vm267, %v349, %v348
        %v351 = vsub.s32 4, %v327
        %v352 = vsel %vm267, %v351, %v327
        %v353 = vsel %vm266, %v262, %v350
        %v354 = vsel %vm266, 0, %v352
        %v355 = vcosq.f32.pop %v353
        %v356 = vsinq.f32.pop %v353
        %vm357 = vweird.f32 %v262
        %v358 = vand.u32 %v354, 3
        %vm359 = vcmp.lt.s32.totalorder %v358, 2
        %vm360 = vcmp.eq.s32.totalorder %v358, 0
        %v361 = vxor.u32 %v356, 2147483648
        %v362 = vsel %vm360, %v355, %v361
        %vm363 = vcmp.eq.s32.totalorder %v358, 2
        %v364 = vxor.u32 %v355, 2147483648
        %v365 = vsel %vm363, %v364, %v356
        %v366 = vsel %vm359, %v362, %v365
        %v367 = vsel %vm357, nan, %v366
        %v368 = vmul.f32 %v264, %v367
        %v369 = vand.u32 2147483647, %v262
        %vm370 = vcmp.le.f32.partialorder %v369, 0.7853982
        %vm371 = vcmp.lt.s32.totalorder %v262, 0
        %v372 = vand.u32 %v262, 2139095040
        %v373 = vshrl.u32 %v372, 23
        %v374 = vsub.s32 %v373, 127
        %v375 = vand.u32 2147483647, %v262
        %v376 = vand.u32 %v375, 8388607
        %v377 = vor.u32 %v376, 8388608
        %v378 = vsub.s32 0, %v377
        %v379 = vadd.s32 %v374, 1
        %vm380 = vcmp.gt.s32.totalorder %v379, 0
        %v381 = vsel %vm380, %v379, 0
        %v382 = vshrl.u32 %v381, 5
        %v383 = vand.u32 %v381, 31
        %v384 = vsub.s32 32, %v383
        %v385 = vshrl.u32 683565275, %v384
        %v386 = vshll.u32 683565275, %v383
        %v387 = vshrl.u32 2475754826, %v384
        %v388 = vor.u32 %v386, %v387
        %v389 = vshll.u32 2475754826, %v383
        %v390 = vshrl.u32 2131351028, %v384
        %v391 = vor.u32 %v389, %v390
        %v392 = vshll.u32 2131351028, %v383
        %v393 = vshrl.u32 2102212464, %v384
        %v394 = vor.u32 %v392, %v393
        %v395 = vshll.u32 2102212464, %v383
        %v396 = vshrl.u32 920167782, %v384
        %v397 = vor.u32 %v395, %v396
        %v398 = vshll.u32 920167782, %v383
        %v399 = vshrl.u32 1326507024, %v384
        %v400 = vor.u32 %v398, %v399
        %vm401 = vcmp.lt.s32.totalorder %v382, 1
        %vm402 = vcmp.lt.s32.totalorder %v382, 2
        %vm403 = vcmp.lt.s32.totalorder %v382, 3
        %vm404 = vcmp.lt.s32.totalorder %v382, 4
        %v405 = vsel %vm401, %v385, %v388
        %v406 = vsel %vm404, %v394, 2102212464
        %v407 = vsel %vm403, %v391, %v406
        %v408 = vsel %vm402, %v405, %v407
        %v409 = vsel %vm401, %v388, %v391
        %v410 = vsel %vm404, %v397, 920167782
        %v411 = vsel %vm403, %v394, %v410
        %v412 = vsel %vm402, %v409, %v411
        %v413 = vsel %vm401, %v391, %v394
        %v414 = vsel %vm404, %v400, 1326507024
        %v415 = vsel %vm403, %v397, %v414
        %v416 = vsel %vm402, %v413, %v415
        %v417 = vshll.u32 %v377, 8
        %v418 = vmul.u32.u64.compose %v417, %v416
        %v419 = vextract.low.u32 %v418
        %v420 = vextract.high.u32 %v418
        %v421 = vmul.u32.u64.compose %v417, %v412
        %v422 = vextract.low.u32 %v421
        %v423 = vextract.high.u32 %v421
        %v424 = vmul.u32 %v417, %v408
        %v425 = vadd.s32 %v420, %v422
        %vm426 = vc.u32 %v420, %v422
        %v427 = vadd.s32 %v423, 1
        %v428 = vsel %vm426, %v427, %v423
        %v429 = vadd.s32 %v424, %v428
        %v430 = vadd.s32 %v429, 536870912
        %v431 = vshrl.u32 %v430, 30
        %v432 = vshll.u32 %v431, 30
        %v433 = vsub.s32 %v429, %v432
        %vm434 = vcmp.lt.s32.totalorder %v433, 0
        %v435 = vsub.s32 0, %v433
        %v436 = vsel %vm434, %v435, %v433
        %v437 = vclz %v436
        %v438 = vsub.s32 %v437, 2
        %vm439 = vcmp.gt.s32.totalorder 0, %v438
        %v440 = vsel %vm439, 0, %v438
        %v441 = vsub.s32 32, %v440
        %v442 = vshll.u32 %v433, %v440
        %v443 = vshrl.u32 %v425, %v441
        %v444 = vor.u32 %v442, %v443
        %v445 = vsub.s32 4294967266, %v440
        %v446 = vadd.s32 %v445, 127
        %v447 = vshll.u32 %v446, 23
        %v448 = vor.u32 4788187, %v447
        %v449 = vand.u32 2147483647, %v448
        %v451 = vcvt.s32.f32 %v444
        %v452 = vmul.f32 %v451, %v449
        %v453 = vxor.u32 %v452, 2147483648
        %v454 = vsel %vm371, %v453, %v452
        %v455 = vsub.s32 4, %v431
        %v456 = vsel %vm371, %v455, %v431
        %v457 = vsel %vm370, %v262, %v454
        %v458 = vsel %vm370, 0, %v456
        %v459 = vcosq.f32.pop %v457
        %v460 = vsinq.f32.pop %v457
        %vm461 = vweird.f32 %v262
        %v462 = vadd.s32 %v458, 3
        %v463 = vand.u32 %v462, 3
        %vm464 = vcmp.lt.s32.totalorder %v463, 2
        %vm465 = vcmp.eq.s32.totalorder %v463, 0
        %v466 = vxor.u32 %v460, 2147483648
        %v467 = vsel %vm465, %v459, %v466
        %vm468 = vcmp.eq.s32.totalorder %v463, 2
        %v469 = vxor.u32 %v459, 2147483648
        %v470 = vsel %vm468, %v469, %v460
        %v471 = vsel %vm464, %v467, %v470
        %v472 = vsel %vm461, nan, %v471
        %v473 = vmul.f32 %v264, %v472
        %v474 = vsub.f32 1.0, %v368
        %v475 = vsub.f32 0.0, %v473
        %v476 = vmul.f32 %v368, 0.9659258
        %v477 = vsub.f32 1.0, %v476
        %v478 = vmul.f32 %v473, -0.9659258
        %v479 = vmul.f32 %v477, %v477
        %v480 = vmul.f32 %v478, %v478
        %v481 = vadd.f32 %v479, %v480
        %v482 = vrcp.pop %v481
        %v483 = vmul.f32 1.2940953, %v482
        %v484 = vmul.f32 %v474, %v477
        %v485 = vmul.f32 %v475, %v478
        %v486 = vadd.f32 %v484, %v485
        %v487 = vmul.f32 %v483, %v486
        %v488 = vmul.f32 %v475, %v477
        %v489 = vmul.f32 %v474, %v478
        %v490 = vsub.f32 %v488, %v489
        %v491 = vmul.f32 %v483, %v490
        %v492 = vld [vmem:[%s3] sm:$0x3]
        %v493 = vadd.f32 %v487, %v492
        %494 = vst [vmem:[%s233] sm:$0x3] %v493
        %495 = vst [vmem:[%s240] sm:$0x3] %v491
        %s496 = sand.u32 %s117, 1
        %s497 = scalar_lea.sflag [#allocation4], %s496
        %s498 = sand.u32 %s117, 1
        %s499 = smul.addr %s498, 2
        %s500 = scalar_lea.vmem [#allocation7], %s499
        %s501 = sand.u32 %s143, 1
        %s502 = scalar_lea.sflag [#allocation9], %s501
        %s503 = sand.u32 %s143, 1
        %s504 = smul.addr %s503, 2
        %s505 = scalar_lea.vmem [#allocation8], %s504
        // Predicated region
        $region45: #{tpu_custom_call.1} parent=35 // pred_check
          %p506 = pneg %p127
        $region46: #{tpu_custom_call.1} parent=35 // pred_check_branch
          %508 = sbr.rel (%p506) target = $region48
        $region47: #{tpu_custom_call.1} parent=35 // pred_region
          %s510 = ssub.s32 32, 32
          %511 = vsyncadd %s497, %s510
          %s512 = smul.addr %s25, 32
          %s513 = scalar_lea.hbm %s4, %s512
          %s515 = sshll.u32 %s500, 4
          %s516 = int_to_ptr.vmem [resolvable:$true] %s515
          %518 = dma.vmem_to_hbm [thread:$0]  %s516, 32, %s513, %s497
        $region48: #{tpu_custom_call.1} parent=35 // pred_fallthru
          _
        // Predicated region
        $region49: #{tpu_custom_call.1} parent=35 // pred_check
          %p519 = pneg %p153
        $region50: #{tpu_custom_call.1} parent=35 // pred_check_branch
          %521 = sbr.rel (%p519) target = $region52
        $region51: #{tpu_custom_call.1} parent=35 // pred_region
          %s523 = ssub.s32 32, 32
          %524 = vsyncadd %s502, %s523
          %s525 = smul.addr %s25, 32
          %s526 = scalar_lea.hbm %s5, %s525
          %s528 = sshll.u32 %s505, 4
          %s529 = int_to_ptr.vmem [resolvable:$true] %s528
          %531 = dma.vmem_to_hbm [thread:$0]  %s529, 32, %s526, %s502
        $region52: #{tpu_custom_call.1} parent=35 // pred_fallthru
          _
      $region36: #{tpu_custom_call.1} parent=5 // pred_fallthru
        _
      %p532 = scmp.le.s32.totalorder 2, %s20
      // Predicated region
      $region53: #{tpu_custom_call.1} parent=5 // pred_check
        %p533 = pneg %p532
      $region54: #{tpu_custom_call.1} parent=5 // pred_check_branch
        %535 = sbr.rel (%p533) target = $region56
      $region55: #{tpu_custom_call.1} parent=5 // pred_region
        %s536 = ssub.s32 %s20, 2
        // Predicated region
        $region57: #{tpu_custom_call.1} parent=55 // pred_check
          %p537 = pneg %p133
        $region58: #{tpu_custom_call.1} parent=55 // pred_check_branch
          %539 = sbr.rel (%p537) target = $region60
        $region59: #{tpu_custom_call.1} parent=55 // pred_region
          %s540 = sand.u32 %s118, 1
          %s541 = scalar_lea.sflag [#allocation4], %s540
          %s542 = sand.u32 %s118, 1
          %s543 = smul.addr %s542, 2
          %s544 = scalar_lea.vmem [#allocation7], %s543
          %545 = dma.done %s541, 32
        $region60: #{tpu_custom_call.1} parent=55 // pred_fallthru
          _
        // Predicated region
        $region61: #{tpu_custom_call.1} parent=55 // pred_check
          %p546 = pneg %p159
        $region62: #{tpu_custom_call.1} parent=55 // pred_check_branch
          %548 = sbr.rel (%p546) target = $region64
        $region63: #{tpu_custom_call.1} parent=55 // pred_region
          %s549 = sand.u32 %s144, 1
          %s550 = scalar_lea.sflag [#allocation9], %s549
          %s551 = sand.u32 %s144, 1
          %s552 = smul.addr %s551, 2
          %s553 = scalar_lea.vmem [#allocation8], %s552
          %554 = dma.done %s550, 32
        $region64: #{tpu_custom_call.1} parent=55 // pred_fallthru
          _
      $region56: #{tpu_custom_call.1} parent=5 // pred_fallthru
        _
    $region6: #{tpu_custom_call.1} parent=1 // loop_footer
      %s24 = sadd.s32 1, %s20
    $region7: #{tpu_custom_call.1} parent=1 // loop_footer_branch
      %19 = sbr.rel target = $region3
    $region8: #{tpu_custom_call.1} parent=1 // loop_exit
      _
    %555 = vsyncpa [#allocation3], 1
    %s556 = scalar_lea.sflag [#allocation3], 1
    %557 = vsyncpa %s556, 1
    %558 = vsyncpa [#allocation4], 1
    %s559 = scalar_lea.sflag [#allocation4], 1
    %560 = vsyncpa %s559, 1
    %561 = vsyncpa [#allocation9], 1
    %s562 = scalar_lea.sflag [#allocation9], 1
    %563 = vsyncpa %s562, 1
    %564 = vsyncpa [#allocation5], 1
    %s565 = scalar_lea.sflag [#allocation5], 1
    %566 = vsyncpa %s565, 1

</llo_original>
